<compile_context>
chip_gen: v6e
topology: v6e:2x2x1
jax: 0.10.0
libtpu: 0.0.40
codegen_flags: <defaults>
</compile_context>

<pallas_src>
import functools

import jax
import jax.numpy as jnp
from jax.experimental import pallas as pl
from jax.experimental.pallas import tpu as pltpu


def _round_up(x, m):
    return -(-x // m) * m


def _transition_kernel(x_ref, w_ref, pw_ref, b_ref, o_ref, xp_ref, *, th, wo):
    # x_ref : (1, C, th, 2W)    row-pair-flattened input rows feeding th output rows
    # w_ref : (Cout, C)         1x1 conv weight, bf16
    # pw_ref: (2W, Wo)          fused 2x2 avg-pool matrix (0.25 entries), bf16
    # b_ref : (Cout, 1)         bias, f32
    # o_ref : (1, Cout, th*Wo)  flattened-spatial NCHW output block, f32
    # xp_ref: (C, th*Wo)        VMEM scratch: pooled activations, bf16
    w = w_ref[...]    # hoisted: loaded once per tile
    pw = pw_ref[...]
    b = b_ref[...]

    # 2x2 average pool for the whole tile into one bf16 slab.  For output row t
    # the two source image rows are concatenated on the lane axis ((Ho, 2W)
    # layout); pw fuses the H pair-sum, the W pair-sum and the 1/4 factor.
    for t in range(th):
        row = x_ref[0, :, t, :].astype(jnp.bfloat16)                   # (C, 2W)
        xp = jnp.dot(row, pw, preferred_element_type=jnp.float32)      # (C, Wo)
        xp_ref[:, pl.ds(t * wo, wo)] = xp.astype(jnp.bfloat16)

    # Single batched 1x1-conv matmul over the whole tile (lane-dense N = th*Wo),
    # one bias broadcast, one unmasked lane-dense store.
    y = jnp.dot(w, xp_ref[...], preferred_element_type=jnp.float32)    # (Cout, th*Wo)
    o_ref[0, :, :] = (y + b).astype(o_ref.dtype)


def _make_pool_matrix(W):
    # pw[r*W + w, v] = 0.25 iff w // 2 == v, for r in {0, 1}: multiplying the
    # lane-concatenated row pair (length 2W) by pw performs the full 2x2 mean.
    Wo = W // 2
    w_in_row = jnp.arange(2 * W) % W
    col = jnp.arange(Wo)
    return jnp.where((w_in_row[:, None] // 2) == col[None, :], 0.25, 0.0).astype(
        jnp.bfloat16
    )


def _pick_row_tile(Ho, Wo, C, Cout, W, *, budget_bytes=12 * 1024 * 1024,
                   max_unroll=32):
    """Largest legal tile of output rows whose full VMEM working set fits."""
    lanes_in = _round_up(2 * W, 128)

    def working_set(t):
        lanes_out = _round_up(t * Wo, 128)
        x_blk = 2 * C * _round_up(t, 8) * lanes_in * 4            # dbl-buffered f32 in
        o_blk = 2 * _round_up(Cout, 8) * lanes_out * 4            # dbl-buffered f32 out
        slab = _round_up(C, 16) * lanes_out * 2                   # bf16 scratch slab
        w_b = 2 * _round_up(Cout, 16) * _round_up(C, 128) * 2     # weight (bf16)
        pw_b = 2 * _round_up(2 * W, 16) * _round_up(Wo, 128) * 2  # pool matrix (bf16)
        b_b = 2 * _round_up(Cout, 8) * 128 * 4                    # bias
        return x_blk + o_blk + slab + w_b + pw_b + b_b

    divisors = [t for t in range(1, Ho + 1) if Ho % t == 0]
    # th == Ho (full extent) is always legal; smaller tiles need sublane- and
    # lane-aligned blocks.
    legal = [t for t in divisors
             if t == Ho or (t % 8 == 0 and (t * Wo) % 128 == 0)]
    fitting = [t for t in legal
               if t <= max_unroll and working_set(t) <= budget_bytes]
    if fitting:
        pref = [t for t in fitting if (t * Wo) % 256 == 0]        # feed 256-wide MXU
        return max(pref) if pref else max(fitting)
    # Best-effort fallback: smallest working set among legal tiles (never raises).
    return min(legal, key=working_set)


def transitional_layer(x_nchw, conv_w, conv_b):
    """x_nchw: (N, C, H, W); conv_w: (Cout, C, 1, 1); conv_b: (Cout,). Returns NCHW."""
    N, C, H, W = x_nchw.shape
    Cout = conv_w.shape[0]
    assert H % 2 == 0 and W % 2 == 0
    Ho, Wo = H // 2, W // 2
    th = _pick_row_tile(Ho, Wo, C, Cout, W)

    # Free reshapes only (contiguous trailing dims), no transposes, no extra HBM pass.
    x2 = x_nchw.reshape(N, C, Ho, 2 * W)            # each "row" = an H-pair of rows
    w2 = conv_w.reshape(Cout, C).astype(jnp.bfloat16)
    b2 = conv_b.reshape(Cout, 1).astype(jnp.float32)
    pw = _make_pool_matrix(W)                       # (2W, Wo) bf16

    out_flat = pl.pallas_call(
        functools.partial(_transition_kernel, th=th, wo=Wo),
        out_shape=jax.ShapeDtypeStruct((N, Cout, Ho * Wo), jnp.float32),
        grid_spec=pltpu.PrefetchScalarGridSpec(
            num_scalar_prefetch=0,
            grid=(N, Ho // th),
            in_specs=[
                pl.BlockSpec((1, C, th, 2 * W), lambda n, r: (n, 0, r, 0)),
                pl.BlockSpec((Cout, C), lambda n, r: (0, 0)),
                pl.BlockSpec((2 * W, Wo), lambda n, r: (0, 0)),
                pl.BlockSpec((Cout, 1), lambda n, r: (0, 0)),
            ],
            out_specs=pl.BlockSpec((1, Cout, th * Wo), lambda n, r: (n, 0, r)),
            scratch_shapes=[pltpu.VMEM((C, th * Wo), jnp.bfloat16)],
        ),
        compiler_params=pltpu.CompilerParams(
            dimension_semantics=("parallel", "parallel"),
            vmem_limit_bytes=32 * 1024 * 1024,
        ),
    )(x2, w2, pw, b2)

    # Free reshape back to NCHW (N, Cout, Ho, Wo).
    return out_flat.reshape(N, Cout, Ho, Wo)


def _reference(x_nchw, conv_w, conv_b):
    # Pure-JAX f32 reference: 1x1 conv + bias, then 2x2 avg pool (stride 2).
    N, C, H, W = x_nchw.shape
    Cout = conv_w.shape[0]
    y = jnp.einsum("nchw,oc->nohw", x_nchw, conv_w.reshape(Cout, C))
    y = y + conv_b[None, :, None, None]
    return y.reshape(N, Cout, H // 2, 2, W // 2, 2).mean(axis=(3, 5))


if __name__ == "__main__":
    key = jax.random.PRNGKey(0)
    k_x, k_w, k_b = jax.random.split(key, 3)

    N, C, H, W = 2, 4, 16, 16
    Cout = C // 2

    x = jax.random.normal(k_x, (N, C, H, W), dtype=jnp.float32)
    # Deterministic synthetic parameters (matches nn.Conv2d(C, C//2, 1) shapes).
    conv_w = jax.random.normal(k_w, (Cout, C, 1, 1), dtype=jnp.float32) * 0.1
    conv_b = jax.random.normal(k_b, (Cout,), dtype=jnp.float32) * 0.1

    out = transitional_layer(x, conv_w, conv_b)
    out = jax.block_until_ready(out)

    ref = _reference(x, conv_w, conv_b)
    assert out.shape == (N, Cout, H // 2, W // 2), out.shape
    # bf16 matmul operands (f32 accumulation) => slightly looser tolerance than pure f32.
    assert jnp.allclose(out, ref, atol=1e-2, rtol=1e-2), float(jnp.max(jnp.abs(out - ref)))

    print("KERNEL_OK")
</pallas_src>

<mosaic_0001>
module attributes {stable_mosaic.version = 11 : i64} {
  func.func @_transition_kernel(%arg0: i32, %arg1: i32, %arg2: memref<1x4x8x32xf32, #tpu.memory_space<vmem>>, %arg3: memref<2x4xbf16, #tpu.memory_space<vmem>>, %arg4: memref<32x8xbf16, #tpu.memory_space<vmem>>, %arg5: memref<2x1xf32, #tpu.memory_space<vmem>>, %arg6: memref<1x2x64xf32, #tpu.memory_space<vmem>>, %arg7: memref<4x64xbf16, #tpu.memory_space<vmem>>) attributes {dimension_semantics = [#tpu.dimension_semantics<parallel>, #tpu.dimension_semantics<parallel>], iteration_bounds = array<i64: 2, 1>, scalar_prefetch = 0 : i64, scratch_operands = 1 : i64, tpu.core_type = #tpu.core_type<tc>, window_params = [{transform_indices = @transform_0, window_bounds = array<i64: 1, 4, 8, 32>}, {pipeline_mode = #tpu.pipeline_mode<synchronous>, transform_indices = @transform_1, window_bounds = array<i64: 2, 4>}, {pipeline_mode = #tpu.pipeline_mode<synchronous>, transform_indices = @transform_2, window_bounds = array<i64: 32, 8>}, {pipeline_mode = #tpu.pipeline_mode<synchronous>, transform_indices = @transform_3, window_bounds = array<i64: 2, 1>}, {transform_indices = @transform_4, window_bounds = array<i64: 1, 2, 64>}]} {
    %c0 = arith.constant 0 : index
    %c0_0 = arith.constant 0 : index
    %0 = vector.load %arg3[%c0, %c0_0] : memref<2x4xbf16, #tpu.memory_space<vmem>>, vector<2x4xbf16>
    %c0_1 = arith.constant 0 : index
    %c0_2 = arith.constant 0 : index
    %1 = vector.load %arg4[%c0_1, %c0_2] : memref<32x8xbf16, #tpu.memory_space<vmem>>, vector<32x8xbf16>
    %c0_3 = arith.constant 0 : index
    %c0_4 = arith.constant 0 : index
    %2 = vector.load %arg5[%c0_3, %c0_4] : memref<2x1xf32, #tpu.memory_space<vmem>>, vector<2x1xf32>
    %c0_5 = arith.constant 0 : index
    %c0_6 = arith.constant 0 : index
    %c0_7 = arith.constant 0 : index
    %c0_8 = arith.constant 0 : index
    %3 = vector.load %arg2[%c0_5, %c0_6, %c0_7, %c0_8] : memref<1x4x8x32xf32, #tpu.memory_space<vmem>>, vector<1x4x1x32xf32>
    %4 = vector.shape_cast %3 : vector<1x4x1x32xf32> to vector<4x32xf32>
    %5 = arith.truncf %4 : vector<4x32xf32> to vector<4x32xbf16>
    %cst = arith.constant dense<0.000000e+00> : vector<4x8xf32>
    %6 = tpu.matmul %5, %1, %cst {dimension_numbers = #tpu.dot_dimension_numbers<[1], [0], [0], [1], [0, 0, 1, 1], [], []>} : vector<4x32xbf16>, vector<32x8xbf16>, vector<4x8xf32> -> vector<4x8xf32>
    %7 = arith.truncf %6 : vector<4x8xf32> to vector<4x8xbf16>
    %c0_9 = arith.constant 0 : index
    %c0_10 = arith.constant 0 : index
    %8 = vector.load %arg7[%c0_9, %c0_10] : memref<4x64xbf16, #tpu.memory_space<vmem>>, vector<4x8xbf16>
    tpu.vector_store %arg7[%c0_9, %c0_10], %7 {strides = array<i32>} : memref<4x64xbf16, #tpu.memory_space<vmem>>, vector<4x8xbf16>,
    %c0_11 = arith.constant 0 : index
    %c0_12 = arith.constant 0 : index
    %c1 = arith.constant 1 : index
    %c0_13 = arith.constant 0 : index
    %9 = vector.load %arg2[%c0_11, %c0_12, %c1, %c0_13] : memref<1x4x8x32xf32, #tpu.memory_space<vmem>>, vector<1x4x1x32xf32>
    %10 = vector.shape_cast %9 : vector<1x4x1x32xf32> to vector<4x32xf32>
    %11 = arith.truncf %10 : vector<4x32xf32> to vector<4x32xbf16>
    %cst_14 = arith.constant dense<0.000000e+00> : vector<4x8xf32>
    %12 = tpu.matmul %11, %1, %cst_14 {dimension_numbers = #tpu.dot_dimension_numbers<[1], [0], [0], [1], [0, 0, 1, 1], [], []>} : vector<4x32xbf16>, vector<32x8xbf16>, vector<4x8xf32> -> vector<4x8xf32>
    %13 = arith.truncf %12 : vector<4x8xf32> to vector<4x8xbf16>
    %c0_15 = arith.constant 0 : index
    %c8 = arith.constant 8 : index
    %14 = vector.load %arg7[%c0_15, %c8] : memref<4x64xbf16, #tpu.memory_space<vmem>>, vector<4x8xbf16>
    tpu.vector_store %arg7[%c0_15, %c8], %13 {strides = array<i32>} : memref<4x64xbf16, #tpu.memory_space<vmem>>, vector<4x8xbf16>,
    %c0_16 = arith.constant 0 : index
    %c0_17 = arith.constant 0 : index
    %c2 = arith.constant 2 : index
    %c0_18 = arith.constant 0 : index
    %15 = vector.load %arg2[%c0_16, %c0_17, %c2, %c0_18] : memref<1x4x8x32xf32, #tpu.memory_space<vmem>>, vector<1x4x1x32xf32>
    %16 = vector.shape_cast %15 : vector<1x4x1x32xf32> to vector<4x32xf32>
    %17 = arith.truncf %16 : vector<4x32xf32> to vector<4x32xbf16>
    %cst_19 = arith.constant dense<0.000000e+00> : vector<4x8xf32>
    %18 = tpu.matmul %17, %1, %cst_19 {dimension_numbers = #tpu.dot_dimension_numbers<[1], [0], [0], [1], [0, 0, 1, 1], [], []>} : vector<4x32xbf16>, vector<32x8xbf16>, vector<4x8xf32> -> vector<4x8xf32>
    %19 = arith.truncf %18 : vector<4x8xf32> to vector<4x8xbf16>
    %c0_20 = arith.constant 0 : index
    %c16 = arith.constant 16 : index
    %20 = vector.load %arg7[%c0_20, %c16] : memref<4x64xbf16, #tpu.memory_space<vmem>>, vector<4x8xbf16>
    tpu.vector_store %arg7[%c0_20, %c16], %19 {strides = array<i32>} : memref<4x64xbf16, #tpu.memory_space<vmem>>, vector<4x8xbf16>,
    %c0_21 = arith.constant 0 : index
    %c0_22 = arith.constant 0 : index
    %c3 = arith.constant 3 : index
    %c0_23 = arith.constant 0 : index
    %21 = vector.load %arg2[%c0_21, %c0_22, %c3, %c0_23] : memref<1x4x8x32xf32, #tpu.memory_space<vmem>>, vector<1x4x1x32xf32>
    %22 = vector.shape_cast %21 : vector<1x4x1x32xf32> to vector<4x32xf32>
    %23 = arith.truncf %22 : vector<4x32xf32> to vector<4x32xbf16>
    %cst_24 = arith.constant dense<0.000000e+00> : vector<4x8xf32>
    %24 = tpu.matmul %23, %1, %cst_24 {dimension_numbers = #tpu.dot_dimension_numbers<[1], [0], [0], [1], [0, 0, 1, 1], [], []>} : vector<4x32xbf16>, vector<32x8xbf16>, vector<4x8xf32> -> vector<4x8xf32>
    %25 = arith.truncf %24 : vector<4x8xf32> to vector<4x8xbf16>
    %c0_25 = arith.constant 0 : index
    %c24 = arith.constant 24 : index
    %26 = vector.load %arg7[%c0_25, %c24] : memref<4x64xbf16, #tpu.memory_space<vmem>>, vector<4x8xbf16>
    tpu.vector_store %arg7[%c0_25, %c24], %25 {strides = array<i32>} : memref<4x64xbf16, #tpu.memory_space<vmem>>, vector<4x8xbf16>,
    %c0_26 = arith.constant 0 : index
    %c0_27 = arith.constant 0 : index
    %c4 = arith.constant 4 : index
    %c0_28 = arith.constant 0 : index
    %27 = vector.load %arg2[%c0_26, %c0_27, %c4, %c0_28] : memref<1x4x8x32xf32, #tpu.memory_space<vmem>>, vector<1x4x1x32xf32>
    %28 = vector.shape_cast %27 : vector<1x4x1x32xf32> to vector<4x32xf32>
    %29 = arith.truncf %28 : vector<4x32xf32> to vector<4x32xbf16>
    %cst_29 = arith.constant dense<0.000000e+00> : vector<4x8xf32>
    %30 = tpu.matmul %29, %1, %cst_29 {dimension_numbers = #tpu.dot_dimension_numbers<[1], [0], [0], [1], [0, 0, 1, 1], [], []>} : vector<4x32xbf16>, vector<32x8xbf16>, vector<4x8xf32> -> vector<4x8xf32>
    %31 = arith.truncf %30 : vector<4x8xf32> to vector<4x8xbf16>
    %c0_30 = arith.constant 0 : index
    %c32 = arith.constant 32 : index
    %32 = vector.load %arg7[%c0_30, %c32] : memref<4x64xbf16, #tpu.memory_space<vmem>>, vector<4x8xbf16>
    tpu.vector_store %arg7[%c0_30, %c32], %31 {strides = array<i32>} : memref<4x64xbf16, #tpu.memory_space<vmem>>, vector<4x8xbf16>,
    %c0_31 = arith.constant 0 : index
    %c0_32 = arith.constant 0 : index
    %c5 = arith.constant 5 : index
    %c0_33 = arith.constant 0 : index
    %33 = vector.load %arg2[%c0_31, %c0_32, %c5, %c0_33] : memref<1x4x8x32xf32, #tpu.memory_space<vmem>>, vector<1x4x1x32xf32>
    %34 = vector.shape_cast %33 : vector<1x4x1x32xf32> to vector<4x32xf32>
    %35 = arith.truncf %34 : vector<4x32xf32> to vector<4x32xbf16>
    %cst_34 = arith.constant dense<0.000000e+00> : vector<4x8xf32>
    %36 = tpu.matmul %35, %1, %cst_34 {dimension_numbers = #tpu.dot_dimension_numbers<[1], [0], [0], [1], [0, 0, 1, 1], [], []>} : vector<4x32xbf16>, vector<32x8xbf16>, vector<4x8xf32> -> vector<4x8xf32>
    %37 = arith.truncf %36 : vector<4x8xf32> to vector<4x8xbf16>
    %c0_35 = arith.constant 0 : index
    %c40 = arith.constant 40 : index
    %38 = vector.load %arg7[%c0_35, %c40] : memref<4x64xbf16, #tpu.memory_space<vmem>>, vector<4x8xbf16>
    tpu.vector_store %arg7[%c0_35, %c40], %37 {strides = array<i32>} : memref<4x64xbf16, #tpu.memory_space<vmem>>, vector<4x8xbf16>,
    %c0_36 = arith.constant 0 : index
    %c0_37 = arith.constant 0 : index
    %c6 = arith.constant 6 : index
    %c0_38 = arith.constant 0 : index
    %39 = vector.load %arg2[%c0_36, %c0_37, %c6, %c0_38] : memref<1x4x8x32xf32, #tpu.memory_space<vmem>>, vector<1x4x1x32xf32>
    %40 = vector.shape_cast %39 : vector<1x4x1x32xf32> to vector<4x32xf32>
    %41 = arith.truncf %40 : vector<4x32xf32> to vector<4x32xbf16>
    %cst_39 = arith.constant dense<0.000000e+00> : vector<4x8xf32>
    %42 = tpu.matmul %41, %1, %cst_39 {dimension_numbers = #tpu.dot_dimension_numbers<[1], [0], [0], [1], [0, 0, 1, 1], [], []>} : vector<4x32xbf16>, vector<32x8xbf16>, vector<4x8xf32> -> vector<4x8xf32>
    %43 = arith.truncf %42 : vector<4x8xf32> to vector<4x8xbf16>
    %c0_40 = arith.constant 0 : index
    %c48 = arith.constant 48 : index
    %44 = vector.load %arg7[%c0_40, %c48] : memref<4x64xbf16, #tpu.memory_space<vmem>>, vector<4x8xbf16>
    tpu.vector_store %arg7[%c0_40, %c48], %43 {strides = array<i32>} : memref<4x64xbf16, #tpu.memory_space<vmem>>, vector<4x8xbf16>,
    %c0_41 = arith.constant 0 : index
    %c0_42 = arith.constant 0 : index
    %c7 = arith.constant 7 : index
    %c0_43 = arith.constant 0 : index
    %45 = vector.load %arg2[%c0_41, %c0_42, %c7, %c0_43] : memref<1x4x8x32xf32, #tpu.memory_space<vmem>>, vector<1x4x1x32xf32>
    %46 = vector.shape_cast %45 : vector<1x4x1x32xf32> to vector<4x32xf32>
    %47 = arith.truncf %46 : vector<4x32xf32> to vector<4x32xbf16>
    %cst_44 = arith.constant dense<0.000000e+00> : vector<4x8xf32>
    %48 = tpu.matmul %47, %1, %cst_44 {dimension_numbers = #tpu.dot_dimension_numbers<[1], [0], [0], [1], [0, 0, 1, 1], [], []>} : vector<4x32xbf16>, vector<32x8xbf16>, vector<4x8xf32> -> vector<4x8xf32>
    %49 = arith.truncf %48 : vector<4x8xf32> to vector<4x8xbf16>
    %c0_45 = arith.constant 0 : index
    %c56 = arith.constant 56 : index
    %50 = vector.load %arg7[%c0_45, %c56] : memref<4x64xbf16, #tpu.memory_space<vmem>>, vector<4x8xbf16>
    tpu.vector_store %arg7[%c0_45, %c56], %49 {strides = array<i32>} : memref<4x64xbf16, #tpu.memory_space<vmem>>, vector<4x8xbf16>,
    %c0_46 = arith.constant 0 : index
    %c0_47 = arith.constant 0 : index
    %51 = vector.load %arg7[%c0_46, %c0_47] : memref<4x64xbf16, #tpu.memory_space<vmem>>, vector<4x64xbf16>
    %cst_48 = arith.constant dense<0.000000e+00> : vector<2x64xf32>
    %52 = tpu.matmul %0, %51, %cst_48 {dimension_numbers = #tpu.dot_dimension_numbers<[1], [0], [0], [1], [0, 0, 1, 1], [], []>} : vector<2x4xbf16>, vector<4x64xbf16>, vector<2x64xf32> -> vector<2x64xf32>
    %53 = vector.broadcast %2 : vector<2x1xf32> to vector<2x64xf32>
    %54 = arith.addf %52, %53 : vector<2x64xf32>
    %c0_49 = arith.constant 0 : index
    %c0_50 = arith.constant 0 : index
    %c0_51 = arith.constant 0 : index
    %55 = vector.load %arg6[%c0_49, %c0_50, %c0_51] : memref<1x2x64xf32, #tpu.memory_space<vmem>>, vector<1x2x64xf32>
    %56 = vector.shape_cast %55 : vector<1x2x64xf32> to vector<2x64xf32>
    %57 = vector.shape_cast %54 : vector<2x64xf32> to vector<1x2x64xf32>
    tpu.vector_store %arg6[%c0_49, %c0_50, %c0_51], %57 {strides = array<i32>} : memref<1x2x64xf32, #tpu.memory_space<vmem>>, vector<1x2x64xf32>,
    return
  }
  func.func @transform_0(%arg0: i32, %arg1: i32) -> (i32, i32, i32, i32) {
    %c0_i32 = arith.constant 0 : i32
    %c0_i32_0 = arith.constant 0 : i32
    %c0_i32_1 = arith.constant 0 : i32
    return %arg0, %c0_i32, %arg1, %c0_i32_0 : i32, i32, i32, i32
  }
  func.func @transform_1(%arg0: i32, %arg1: i32) -> (i32, i32) {
    %c0_i32 = arith.constant 0 : i32
    %c0_i32_0 = arith.constant 0 : i32
    %c0_i32_1 = arith.constant 0 : i32
    return %c0_i32, %c0_i32_0 : i32, i32
  }
  func.func @transform_2(%arg0: i32, %arg1: i32) -> (i32, i32) {
    %c0_i32 = arith.constant 0 : i32
    %c0_i32_0 = arith.constant 0 : i32
    %c0_i32_1 = arith.constant 0 : i32
    return %c0_i32, %c0_i32_0 : i32, i32
  }
  func.func @transform_3(%arg0: i32, %arg1: i32) -> (i32, i32) {
    %c0_i32 = arith.constant 0 : i32
    %c0_i32_0 = arith.constant 0 : i32
    %c0_i32_1 = arith.constant 0 : i32
    return %c0_i32, %c0_i32_0 : i32, i32
  }
  func.func @transform_4(%arg0: i32, %arg1: i32) -> (i32, i32, i32) {
    %c0_i32 = arith.constant 0 : i32
    %c0_i32_0 = arith.constant 0 : i32
    return %arg0, %c0_i32, %arg1 : i32, i32, i32
  }
}

</mosaic_0001>

<llo_original>
// kernel: tpu_custom_call.1
$region0: #{tpu_custom_call.1}
  #allocation0 [shape = 'u32[]', space=smem, size = 0x4, offset = 0x4, fixed_abs, tag = 'smem constant byte address 0x4 - core index']
  #allocation1 [shape = 'u32[144,128]{1,0:T(1,128)}', space=vmem, size = 0x12000, scoped, tag = 'internal scratch']
  #allocation2 [shape = 'bf16[4,64]{1,0:T(4,128)(2,1)}', space=vmem, size = 0x400, scoped, tag = 'scratch operand']
  %s0 = inlined_call_operand.hbm [shape: f32[2,4,8,32], index: 0, kind: input, shape index: {}]
  %s1 = inlined_call_operand.vmem [shape: bf16[2,4], index: 1, kind: input, shape index: {}]
  %s2 = inlined_call_operand.vmem [shape: bf16[32,8], index: 2, kind: input, shape index: {}]
  %s3 = inlined_call_operand.vmem [shape: f32[2,1], index: 3, kind: input, shape index: {}]
  %s4 = inlined_call_operand.hbm [shape: f32[2,2,64], index: 4, kind: output, shape index: {}]
  %s5 = sld [smem:[#allocation0]]
  $region53: #{tpu_custom_call.1} parent=0
    _
  %s7 = ssub.s32 1, %s5
  %s8 = scalar_select 0, %s7, %s5
  $region1: #{tpu_custom_call.1} parent=0
    #allocation3 [shape = 'u8[32768]{0}', space=vmem, size = 0x8000, scoped, tag = 'input window, operand 0']
    #allocation4 [shape = 's32[2]{0}', space=sflag, size = 0x8, scoped, tag = 'scoped memory for tpu_custom_call.1']
    #allocation5 [shape = 's32[2]{0}', space=sflag, size = 0x8, scoped, tag = 'scoped memory for tpu_custom_call.1']
    #allocation6 [shape = 'u8[2048]{0}', space=vmem, size = 0x800, scoped, tag = 'output window, operand 0']
    %9 = vsyncpa [#allocation4], 0
    %s10 = scalar_lea.sflag [#allocation4], 1
    %11 = vsyncpa %s10, 0
    %12 = vsyncpa [#allocation5], 0
    %s13 = scalar_lea.sflag [#allocation5], 1
    %14 = vsyncpa %s13, 0
    loop: start=0, step=1, limit=4
    $region2: #{tpu_custom_call.1} parent=1 // loop_pre_header
      _
    $region3: #{tpu_custom_call.1} parent=1 // loop_header
      %s16 = sphi 0, %s20
      %p17 = scmp.ge.s32.totalorder %s16, 4
      %s23 = sphi 0, %s35
      %s24 = sphi 0, %s31
      %s25 = sphi 0, %s23
      %s26 = sphi 0, %s24
      %s27 = sphi 0, %s25
      %s28 = sphi 0, %s26
      %s40 = sphi 0, %s42
      %s43 = sphi 0, %s40
      %s44 = sphi 0, %s43
      %s60 = sphi 0, %s44
      %s64 = sphi 0, %s64
      %s66 = sphi 0, %s64
      %s67 = sphi 0, %s66
      %s81 = sphi 0, %s67
      %s85 = sphi 0, %s85
      %s87 = sphi 0, %s85
      %s88 = sphi 0, %s87
      %s102 = sphi 0, %s88
      %s106 = sphi 0, %s106
      %s108 = sphi 0, %s106
      %s109 = sphi 0, %s108
      %s123 = sphi 0, %s109
      %s131 = sphi 0, %s133
      %s134 = sphi 0, %s131
      %s135 = sphi 0, %s134
      %s151 = sphi 0, %s135
    $region4: #{tpu_custom_call.1} parent=1 // loop_header_branch
      %19 = sbr.rel (%p17) target = $region8
    $region5: #{tpu_custom_call.1} parent=1 // loop_body
      %s21 = ssub.s32 %s16, 1
      %s22 = ssub.s32 %s16, 2
      %s29 = sadd.s32 1, %s24
      %p30 = scmp.ge.s32.totalorder %s29, 1
      %s31 = scalar_select %p30, 0, %s29
      %s32 = sadd.s32 1, %s23
      %s33 = scalar_select %p30, %s32, %s23
      %p34 = scmp.ge.s32.totalorder %s33, 2
      %s35 = scalar_select %p34, 0, %s33
      %s36 = ssub.s32 %s23, %s35
      %s37 = ssub.s32 %s24, %s31
      %s38 = sor.u32 %s36, %s37
      %p39 = scmp.eq.s32.totalorder %s38, 0
      %s41 = sadd.s32 %s40, 1
      %s42 = scalar_select %p39, %s40, %s41
      %p45 = pneg %p39
      %p46 = scmp.eq.s32.totalorder %s16, 1
      %p47 = por %p45, %p46
      %p48 = scmp.ne.s32.totalorder %s40, %s43
      %p49 = scmp.eq.s32.totalorder %s16, 0
      %p50 = por %p48, %p49
      %p51 = scmp.ne.s32.totalorder %s40, %s43
      %p52 = scmp.eq.s32.totalorder %s21, 1
      %p53 = por %p51, %p52
      %p54 = scmp.ne.s32.totalorder %s43, %s44
      %p55 = scmp.eq.s32.totalorder %s21, 0
      %p56 = por %p54, %p55
      %p57 = scmp.ne.s32.totalorder %s43, %s44
      %p58 = scmp.eq.s32.totalorder %s22, 1
      %p59 = por %p57, %p58
      %p61 = scmp.ne.s32.totalorder %s44, %s60
      %p62 = scmp.eq.s32.totalorder %s22, 0
      %p63 = por %p61, %p62
      %s65 = sadd.s32 %s64, 1
      %p68 = scmp.eq.s32.totalorder %s16, 1
      %p69 = scmp.ne.s32.totalorder %s64, %s66
      %p70 = scmp.eq.s32.totalorder %s16, 0
      %p71 = por %p69, %p70
      %p72 = scmp.ne.s32.totalorder %s64, %s66
      %p73 = scmp.eq.s32.totalorder %s21, 1
      %p74 = por %p72, %p73
      %p75 = scmp.ne.s32.totalorder %s66, %s67
      %p76 = scmp.eq.s32.totalorder %s21, 0
      %p77 = por %p75, %p76
      %p78 = scmp.ne.s32.totalorder %s66, %s67
      %p79 = scmp.eq.s32.totalorder %s22, 1
      %p80 = por %p78, %p79
      %p82 = scmp.ne.s32.totalorder %s67, %s81
      %p83 = scmp.eq.s32.totalorder %s22, 0
      %p84 = por %p82, %p83
      %s86 = sadd.s32 %s85, 1
      %p89 = scmp.eq.s32.totalorder %s16, 1
      %p90 = scmp.ne.s32.totalorder %s85, %s87
      %p91 = scmp.eq.s32.totalorder %s16, 0
      %p92 = por %p90, %p91
      %p93 = scmp.ne.s32.totalorder %s85, %s87
      %p94 = scmp.eq.s32.totalorder %s21, 1
      %p95 = por %p93, %p94
      %p96 = scmp.ne.s32.totalorder %s87, %s88
      %p97 = scmp.eq.s32.totalorder %s21, 0
      %p98 = por %p96, %p97
      %p99 = scmp.ne.s32.totalorder %s87, %s88
      %p100 = scmp.eq.s32.totalorder %s22, 1
      %p101 = por %p99, %p100
      %p103 = scmp.ne.s32.totalorder %s88, %s102
      %p104 = scmp.eq.s32.totalorder %s22, 0
      %p105 = por %p103, %p104
      %s107 = sadd.s32 %s106, 1
      %p110 = scmp.eq.s32.totalorder %s16, 1
      %p111 = scmp.ne.s32.totalorder %s106, %s108
      %p112 = scmp.eq.s32.totalorder %s16, 0
      %p113 = por %p111, %p112
      %p114 = scmp.ne.s32.totalorder %s106, %s108
      %p115 = scmp.eq.s32.totalorder %s21, 1
      %p116 = por %p114, %p115
      %p117 = scmp.ne.s32.totalorder %s108, %s109
      %p118 = scmp.eq.s32.totalorder %s21, 0
      %p119 = por %p117, %p118
      %p120 = scmp.ne.s32.totalorder %s108, %s109
      %p121 = scmp.eq.s32.totalorder %s22, 1
      %p122 = por %p120, %p121
      %p124 = scmp.ne.s32.totalorder %s109, %s123
      %p125 = scmp.eq.s32.totalorder %s22, 0
      %p126 = por %p124, %p125
      %s127 = ssub.s32 %s23, %s35
      %s128 = ssub.s32 %s24, %s31
      %s129 = sor.u32 %s127, %s128
      %p130 = scmp.eq.s32.totalorder %s129, 0
      %s132 = sadd.s32 %s131, 1
      %s133 = scalar_select %p130, %s131, %s132
      %p136 = pneg %p130
      %p137 = scmp.eq.s32.totalorder %s16, 1
      %p138 = por %p136, %p137
      %p139 = scmp.ne.s32.totalorder %s131, %s134
      %p140 = scmp.eq.s32.totalorder %s16, 0
      %p141 = por %p139, %p140
      %p142 = scmp.ne.s32.totalorder %s131, %s134
      %p143 = scmp.eq.s32.totalorder %s21, 1
      %p144 = por %p142, %p143
      %p145 = scmp.ne.s32.totalorder %s134, %s135
      %p146 = scmp.eq.s32.totalorder %s21, 0
      %p147 = por %p145, %p146
      %p148 = scmp.ne.s32.totalorder %s134, %s135
      %p149 = scmp.eq.s32.totalorder %s22, 1
      %p150 = por %p148, %p149
      %p152 = scmp.ne.s32.totalorder %s135, %s151
      %p153 = scmp.eq.s32.totalorder %s22, 0
      %p154 = por %p152, %p153
      %p155 = scmp.le.s32.totalorder 1, %s16
      %p156 = scmp.lt.s32.totalorder %s16, 3
      %p157 = pnand %p155, %p156
      %p158 = pneg %p157
      // Predicated region
      $region9: #{tpu_custom_call.1} parent=5 // pred_check
        _
      $region10: #{tpu_custom_call.1} parent=5 // pred_check_branch
        %160 = sbr.rel (%p157) target = $region12
      $region11: #{tpu_custom_call.1} parent=5 // pred_region
        %s161 = ssub.s32 %s16, 1
        // Predicated region
        $region13: #{tpu_custom_call.1} parent=11 // pred_check
          %p162 = pneg %p77
        $region14: #{tpu_custom_call.1} parent=11 // pred_check_branch
          %164 = sbr.rel (%p162) target = $region16
        $region15: #{tpu_custom_call.1} parent=11 // pred_region
          _
        $region16: #{tpu_custom_call.1} parent=11 // pred_fallthru
          _
        // Predicated region
        $region17: #{tpu_custom_call.1} parent=11 // pred_check
          %p165 = pneg %p98
        $region18: #{tpu_custom_call.1} parent=11 // pred_check_branch
          %167 = sbr.rel (%p165) target = $region20
        $region19: #{tpu_custom_call.1} parent=11 // pred_region
          _
        $region20: #{tpu_custom_call.1} parent=11 // pred_fallthru
          _
        // Predicated region
        $region21: #{tpu_custom_call.1} parent=11 // pred_check
          %p168 = pneg %p119
        $region22: #{tpu_custom_call.1} parent=11 // pred_check_branch
          %170 = sbr.rel (%p168) target = $region24
        $region23: #{tpu_custom_call.1} parent=11 // pred_region
          _
        $region24: #{tpu_custom_call.1} parent=11 // pred_fallthru
          _
      $region12: #{tpu_custom_call.1} parent=5 // pred_fallthru
        _
      %p171 = scmp.lt.s32.totalorder %s16, 2
      // Predicated region
      $region25: #{tpu_custom_call.1} parent=5 // pred_check
        %p172 = pneg %p171
      $region26: #{tpu_custom_call.1} parent=5 // pred_check_branch
        %174 = sbr.rel (%p172) target = $region28
      $region27: #{tpu_custom_call.1} parent=5 // pred_region
        // Predicated region
        $region29: #{tpu_custom_call.1} parent=27 // pred_check
          %p175 = pneg %p50
        $region30: #{tpu_custom_call.1} parent=27 // pred_check_branch
          %177 = sbr.rel (%p175) target = $region32
        $region31: #{tpu_custom_call.1} parent=27 // pred_region
          %s178 = sand.u32 %s40, 1
          %s179 = scalar_lea.sflag [#allocation4], %s178
          %s180 = sand.u32 %s40, 1
          %s181 = smul.addr %s180, 32
          %s182 = scalar_lea.vmem [#allocation3], %s181
          %s184 = ssub.s32 512, 512
          %185 = vsyncadd %s179, %s184
          %s186 = smul.addr %s23, 4
          %s187 = sadd.s32 %s24, %s186
          %s188 = smul.addr %s187, 128
          %s189 = scalar_lea.hbm %s0, %s188
          %s190 = sshll.u32 %s182, 4
          %s191 = int_to_ptr.vmem [resolvable:$true] %s190
          %196 = dma.hbm_to_vmem [thread:$0]  %s189, 512, %s191, %s179, 128, 128, 8
        $region32: #{tpu_custom_call.1} parent=27 // pred_fallthru
          _
      $region28: #{tpu_custom_call.1} parent=5 // pred_fallthru
        _
      %p197 = scmp.le.s32.totalorder 1, %s16
      %p198 = scmp.lt.s32.totalorder %s16, 3
      %p199 = pnand %p197, %p198
      %p200 = pneg %p199
      // Predicated region
      $region33: #{tpu_custom_call.1} parent=5 // pred_check
        _
      $region34: #{tpu_custom_call.1} parent=5 // pred_check_branch
        %202 = sbr.rel (%p199) target = $region36
      $region35: #{tpu_custom_call.1} parent=5 // pred_region
        %s203 = ssub.s32 %s16, 1
        %s204 = sand.u32 %s43, 1
        %s205 = scalar_lea.sflag [#allocation4], %s204
        %s206 = sand.u32 %s43, 1
        %s207 = smul.addr %s206, 32
        %s208 = scalar_lea.vmem [#allocation3], %s207
        // Predicated region
        $region37: #{tpu_custom_call.1} parent=35 // pred_check
          %p209 = pneg %p56
        $region38: #{tpu_custom_call.1} parent=35 // pred_check_branch
          %211 = sbr.rel (%p209) target = $region40
        $region39: #{tpu_custom_call.1} parent=35 // pred_region
          %212 = dma.done %s205, 512
        $region40: #{tpu_custom_call.1} parent=35 // pred_fallthru
          _
        %s213 = sand.u32 %s43, 1
        %s214 = scalar_lea.sflag [#allocation4], %s213
        %s215 = sand.u32 %s43, 1
        %s216 = smul.addr %s215, 32
        %s217 = scalar_lea.vmem [#allocation3], %s216
        %p218 = pneg %p56
        %p219 = pneg %p53
        %p220 = pneg %p77
        %p221 = pneg %p74
        %p222 = pneg %p98
        %p223 = pneg %p95
        %p224 = pneg %p119
        %p225 = pneg %p116
        %p226 = pneg %p147
        %p227 = pneg %p144
        %s228 = sand.u32 %s134, 1
        %s229 = scalar_lea.sflag [#allocation5], %s228
        %s230 = sand.u32 %s134, 1
        %s231 = smul.addr %s230, 2
        %s232 = scalar_lea.vmem [#allocation6], %s231
        %v234 = vld [vmem:[%s1] sm:$0x1]
        %v235 = vld [vmem:[%s2] sm:$0xf]
        %v236 = vld [vmem:[%s2 + $0x4] sm:$0xf]
        %v237 = vld [vmem:[%s2 + $0x8] sm:$0xf]
        %v238 = vld [vmem:[%s2 + $0xc] sm:$0xf]
        %v239 = vld [vmem:[%s3] sm:$0x3]
        %v240 = vld [vmem:[%s208] sm:$0x1]
        %v241 = vld [vmem:[%s208 + $0x8] sm:$0x1]
        %v242 = vld [vmem:[%s208 + $0x10] sm:$0x1]
        %v243 = vld [vmem:[%s208 + $0x18] sm:$0x1]
        %v244 = vpack.c.bf16 %v240, %v240
        %v245 = vpack.c.bf16 %v241, %v241
        %v246 = vpack.c.bf16 %v242, %v242
        %v247 = vpack.c.bf16 %v243, %v243
        %v252 = vunpack.c.l.b16 %v244
        %v253 = vunpack.c.l.b16 %v245
        %v254 = vunpack.c.l.b16 %v246
        %v255 = vunpack.c.l.b16 %v247
        %v256 = vrot.slane %v253, 7
        %vm257 = vcmask 1041409
        %v258 = vsel %vm257, %v256, %v252
        %v259 = vrot.slane %v254, 6
        %vm260 = vcmask 1042434
        %v261 = vsel %vm260, %v259, %v258
        %v262 = vrot.slane %v255, 5
        %vm263 = vcmask 1043459
        %v264 = vsel %vm263, %v262, %v261
        %v265 = vpack.c.b16 %v264, %v264
        %v270 = vunpack.c.l.b16 %v235
        %v271 = vunpack.c.l.b16 %v236
        %v272 = vunpack.c.l.b16 %v237
        %v273 = vunpack.c.l.b16 %v238
        %v274 = vpack.c.b16 %v271, %v270
        %v275 = vpack.c.b16 %v273, %v272
        %vm278 = vcmask 261120
        %v280 = vsel %vm278, %v265, 0
        %282 = vmatprep.subr.bf16.mxu0 0
        %283 = vmatpush1.bf16.msra.mxu0 0
        %284 = vmatprep.subr.bf16.mxu0 0
        %285 = vmatpush1.bf16.msra.mxu0 0
        %286 = vmatprep.subr.bf16.mxu0 0
        %287 = vmatpush1.bf16.msra.mxu0 0
        %288 = vmatprep.subr.bf16.mxu0 0
        %289 = vmatpush1.bf16.msra.mxu0 0
        %290 = vmatprep.subr.bf16.mxu0 0
        %291 = vmatpush1.bf16.msra.mxu0 0
        %292 = vmatprep.subr.bf16.mxu0 0
        %293 = vmatpush1.bf16.msra.mxu0 0
        %294 = vmatprep.subr.bf16.mxu0 0
        %295 = vmatpush1.bf16.msra.mxu0 %v275
        %296 = vmatprep.subr.bf16.mxu0 0
        %297 = vmatpush1.bf16.msra.mxu0 %v274
        %298 = vmatprep.subr.bf16.mxu0 0
        %299 = vmatpush2.bf16.msra.mxu0 0
        %300 = vmatprep.subr.bf16.mxu0 0
        %301 = vmatpush2.bf16.msra.mxu0 0
        %302 = vmatprep.subr.bf16.mxu0 0
        %303 = vmatpush2.bf16.msra.mxu0 0
        %304 = vmatprep.subr.bf16.mxu0 0
        %305 = vmatpush2.bf16.msra.mxu0 0
        %306 = vmatprep.subr.bf16.mxu0 0
        %307 = vmatpush2.bf16.msra.mxu0 0
        %308 = vmatprep.subr.bf16.mxu0 0
        %309 = vmatpush2.bf16.msra.mxu0 0
        %310 = vmatprep.subr.bf16.mxu0 0
        %311 = vmatpush2.bf16.msra.mxu0 0
        %312 = vmatprep.subr.bf16.mxu0 0
        %313 = vmatpush2.bf16.msra.mxu0 0
        %314 = vmatprep.mubr.bf16.mxu0 0
        %315 = vmatmul.mubr.bf16.gmra.mxu0 %v280
        %v316 = vpop.f32.mrf.mxu0
        %v317 = vadd.f32 0.0, %v316
        %v318 = vpop.f32.mrf.mxu0
        %v319 = vpop.f32.mrf.mxu0
        %v320 = vpop.f32.mrf.mxu0
        %321 = vdwg.mxu0
        %v322 = vpack.c.bf16 %v317, %v317
        %vm323 = vcmask 58368
        %324 = vst.msk [vmem:[#allocation2] sm:$0x3] %vm323, %v322
        %v325 = vld [vmem:[%s208 + $0x1] sm:$0x1]
        %v326 = vld [vmem:[%s208 + $0x9] sm:$0x1]
        %v327 = vld [vmem:[%s208 + $0x11] sm:$0x1]
        %v328 = vld [vmem:[%s208 + $0x19] sm:$0x1]
        %v329 = vpack.c.bf16 %v325, %v325
        %v330 = vpack.c.bf16 %v326, %v326
        %v331 = vpack.c.bf16 %v327, %v327
        %v332 = vpack.c.bf16 %v328, %v328
        %v337 = vunpack.c.l.b16 %v329
        %v338 = vunpack.c.l.b16 %v330
        %v339 = vunpack.c.l.b16 %v331
        %v340 = vunpack.c.l.b16 %v332
        %v341 = vrot.slane %v338, 7
        %v342 = vsel %vm257, %v341, %v337
        %v343 = vrot.slane %v339, 6
        %v344 = vsel %vm260, %v343, %v342
        %v345 = vrot.slane %v340, 5
        %v346 = vsel %vm263, %v345, %v344
        %v347 = vpack.c.b16 %v346, %v346
        %v349 = vsel %vm278, %v347, 0
        %351 = vmatprep.subr.bf16.mxu0 0
        %352 = vmatpush1.bf16.msra.mxu0 0
        %353 = vmatprep.subr.bf16.mxu0 0
        %354 = vmatpush1.bf16.msra.mxu0 0
        %355 = vmatprep.subr.bf16.mxu0 0
        %356 = vmatpush1.bf16.msra.mxu0 0
        %357 = vmatprep.subr.bf16.mxu0 0
        %358 = vmatpush1.bf16.msra.mxu0 0
        %359 = vmatprep.subr.bf16.mxu0 0
        %360 = vmatpush1.bf16.msra.mxu0 0
        %361 = vmatprep.subr.bf16.mxu0 0
        %362 = vmatpush1.bf16.msra.mxu0 0
        %363 = vmatprep.subr.bf16.mxu0 0
        %364 = vmatpush1.bf16.msra.mxu0 %v275
        %365 = vmatprep.subr.bf16.mxu0 0
        %366 = vmatpush1.bf16.msra.mxu0 %v274
        %367 = vmatprep.subr.bf16.mxu0 0
        %368 = vmatpush2.bf16.msra.mxu0 0
        %369 = vmatprep.subr.bf16.mxu0 0
        %370 = vmatpush2.bf16.msra.mxu0 0
        %371 = vmatprep.subr.bf16.mxu0 0
        %372 = vmatpush2.bf16.msra.mxu0 0
        %373 = vmatprep.subr.bf16.mxu0 0
        %374 = vmatpush2.bf16.msra.mxu0 0
        %375 = vmatprep.subr.bf16.mxu0 0
        %376 = vmatpush2.bf16.msra.mxu0 0
        %377 = vmatprep.subr.bf16.mxu0 0
        %378 = vmatpush2.bf16.msra.mxu0 0
        %379 = vmatprep.subr.bf16.mxu0 0
        %380 = vmatpush2.bf16.msra.mxu0 0
        %381 = vmatprep.subr.bf16.mxu0 0
        %382 = vmatpush2.bf16.msra.mxu0 0
        %383 = vmatprep.mubr.bf16.mxu0 0
        %384 = vmatmul.mubr.bf16.gmra.mxu0 %v349
        %v385 = vpop.f32.mrf.mxu0
        %v386 = vadd.f32 0.0, %v385
        %v387 = vpop.f32.mrf.mxu0
        %v388 = vpop.f32.mrf.mxu0
        %v389 = vpop.f32.mrf.mxu0
        %390 = vdwg.mxu0
        %v391 = vpack.c.bf16 %v386, %v386
        %v394 = vunpack.c.l.s4 1983009808
        %v395 = vunpack.c.0.s8 %v394
        %v396 = vlaneseq
        %v397 = vshrl.u32 %v396, 7
        %v398 = vsub.s32 %v395, %v397
        %v399 = vrot.slane %v391, %v398
        %400 = vrot.lane.b32.xlu0 %v399, 8
        %v401 = vpop.permute.xlu0 %400
        %vm403 = vcmask 123968
        %404 = vst.msk [vmem:[#allocation2] sm:$0x3] %vm403, %v401
        %v405 = vld [vmem:[%s208 + $0x2] sm:$0x1]
        %v406 = vld [vmem:[%s208 + $0xa] sm:$0x1]
        %v407 = vld [vmem:[%s208 + $0x12] sm:$0x1]
        %v408 = vld [vmem:[%s208 + $0x1a] sm:$0x1]
        %v409 = vpack.c.bf16 %v405, %v405
        %v410 = vpack.c.bf16 %v406, %v406
        %v411 = vpack.c.bf16 %v407, %v407
        %v412 = vpack.c.bf16 %v408, %v408
        %v417 = vunpack.c.l.b16 %v409
        %v418 = vunpack.c.l.b16 %v410
        %v419 = vunpack.c.l.b16 %v411
        %v420 = vunpack.c.l.b16 %v412
        %v421 = vrot.slane %v418, 7
        %v422 = vsel %vm257, %v421, %v417
        %v423 = vrot.slane %v419, 6
        %v424 = vsel %vm260, %v423, %v422
        %v425 = vrot.slane %v420, 5
        %v426 = vsel %vm263, %v425, %v424
        %v427 = vpack.c.b16 %v426, %v426
        %v429 = vsel %vm278, %v427, 0
        %431 = vmatprep.subr.bf16.mxu0 0
        %432 = vmatpush1.bf16.msra.mxu0 0
        %433 = vmatprep.subr.bf16.mxu0 0
        %434 = vmatpush1.bf16.msra.mxu0 0
        %435 = vmatprep.subr.bf16.mxu0 0
        %436 = vmatpush1.bf16.msra.mxu0 0
        %437 = vmatprep.subr.bf16.mxu0 0
        %438 = vmatpush1.bf16.msra.mxu0 0
        %439 = vmatprep.subr.bf16.mxu0 0
        %440 = vmatpush1.bf16.msra.mxu0 0
        %441 = vmatprep.subr.bf16.mxu0 0
        %442 = vmatpush1.bf16.msra.mxu0 0
        %443 = vmatprep.subr.bf16.mxu0 0
        %444 = vmatpush1.bf16.msra.mxu0 %v275
        %445 = vmatprep.subr.bf16.mxu0 0
        %446 = vmatpush1.bf16.msra.mxu0 %v274
        %447 = vmatprep.subr.bf16.mxu0 0
        %448 = vmatpush2.bf16.msra.mxu0 0
        %449 = vmatprep.subr.bf16.mxu0 0
        %450 = vmatpush2.bf16.msra.mxu0 0
        %451 = vmatprep.subr.bf16.mxu0 0
        %452 = vmatpush2.bf16.msra.mxu0 0
        %453 = vmatprep.subr.bf16.mxu0 0
        %454 = vmatpush2.bf16.msra.mxu0 0
        %455 = vmatprep.subr.bf16.mxu0 0
        %456 = vmatpush2.bf16.msra.mxu0 0
        %457 = vmatprep.subr.bf16.mxu0 0
        %458 = vmatpush2.bf16.msra.mxu0 0
        %459 = vmatprep.subr.bf16.mxu0 0
        %460 = vmatpush2.bf16.msra.mxu0 0
        %461 = vmatprep.subr.bf16.mxu0 0
        %462 = vmatpush2.bf16.msra.mxu0 0
        %463 = vmatprep.mubr.bf16.mxu0 0
        %464 = vmatmul.mubr.bf16.gmra.mxu0 %v429
        %v465 = vpop.f32.mrf.mxu0
        %v466 = vadd.f32 0.0, %v465
        %v467 = vpop.f32.mrf.mxu0
        %v468 = vpop.f32.mrf.mxu0
        %v469 = vpop.f32.mrf.mxu0
        %470 = vdwg.mxu0
        %v471 = vpack.c.bf16 %v466, %v466
        %v474 = vunpack.c.l.s4 1983009808
        %v475 = vunpack.c.0.s8 %v474
        %v476 = vlaneseq
        %v477 = vshrl.u32 %v476, 7
        %v478 = vsub.s32 %v475, %v477
        %v479 = vrot.slane %v471, %v478
        %480 = vrot.lane.b32.xlu0 %v479, 16
        %v481 = vpop.permute.xlu0 %480
        %vm483 = vcmask 189568
        %484 = vst.msk [vmem:[#allocation2] sm:$0x3] %vm483, %v481
        %v485 = vld [vmem:[%s208 + $0x3] sm:$0x1]
        %v486 = vld [vmem:[%s208 + $0xb] sm:$0x1]
        %v487 = vld [vmem:[%s208 + $0x13] sm:$0x1]
        %v488 = vld [vmem:[%s208 + $0x1b] sm:$0x1]
        %v489 = vpack.c.bf16 %v485, %v485
        %v490 = vpack.c.bf16 %v486, %v486
        %v491 = vpack.c.bf16 %v487, %v487
        %v492 = vpack.c.bf16 %v488, %v488
        %v497 = vunpack.c.l.b16 %v489
        %v498 = vunpack.c.l.b16 %v490
        %v499 = vunpack.c.l.b16 %v491
        %v500 = vunpack.c.l.b16 %v492
        %v501 = vrot.slane %v498, 7
        %v502 = vsel %vm257, %v501, %v497
        %v503 = vrot.slane %v499, 6
        %v504 = vsel %vm260, %v503, %v502
        %v505 = vrot.slane %v500, 5
        %v506 = vsel %vm263, %v505, %v504
        %v507 = vpack.c.b16 %v506, %v506
        %v509 = vsel %vm278, %v507, 0
        %511 = vmatprep.subr.bf16.mxu0 0
        %512 = vmatpush1.bf16.msra.mxu0 0
        %513 = vmatprep.subr.bf16.mxu0 0
        %514 = vmatpush1.bf16.msra.mxu0 0
        %515 = vmatprep.subr.bf16.mxu0 0
        %516 = vmatpush1.bf16.msra.mxu0 0
        %517 = vmatprep.subr.bf16.mxu0 0
        %518 = vmatpush1.bf16.msra.mxu0 0
        %519 = vmatprep.subr.bf16.mxu0 0
        %520 = vmatpush1.bf16.msra.mxu0 0
        %521 = vmatprep.subr.bf16.mxu0 0
        %522 = vmatpush1.bf16.msra.mxu0 0
        %523 = vmatprep.subr.bf16.mxu0 0
        %524 = vmatpush1.bf16.msra.mxu0 %v275
        %525 = vmatprep.subr.bf16.mxu0 0
        %526 = vmatpush1.bf16.msra.mxu0 %v274
        %527 = vmatprep.subr.bf16.mxu0 0
        %528 = vmatpush2.bf16.msra.mxu0 0
        %529 = vmatprep.subr.bf16.mxu0 0
        %530 = vmatpush2.bf16.msra.mxu0 0
        %531 = vmatprep.subr.bf16.mxu0 0
        %532 = vmatpush2.bf16.msra.mxu0 0
        %533 = vmatprep.subr.bf16.mxu0 0
        %534 = vmatpush2.bf16.msra.mxu0 0
        %535 = vmatprep.subr.bf16.mxu0 0
        %536 = vmatpush2.bf16.msra.mxu0 0
        %537 = vmatprep.subr.bf16.mxu0 0
        %538 = vmatpush2.bf16.msra.mxu0 0
        %539 = vmatprep.subr.bf16.mxu0 0
        %540 = vmatpush2.bf16.msra.mxu0 0
        %541 = vmatprep.subr.bf16.mxu0 0
        %542 = vmatpush2.bf16.msra.mxu0 0
        %543 = vmatprep.mubr.bf16.mxu0 0
        %544 = vmatmul.mubr.bf16.gmra.mxu0 %v509
        %v545 = vpop.f32.mrf.mxu0
        %v546 = vadd.f32 0.0, %v545
        %v547 = vpop.f32.mrf.mxu0
        %v548 = vpop.f32.mrf.mxu0
        %v549 = vpop.f32.mrf.mxu0
        %550 = vdwg.mxu0
        %v551 = vpack.c.bf16 %v546, %v546
        %v554 = vunpack.c.l.s4 1983009808
        %v555 = vunpack.c.0.s8 %v554
        %v556 = vlaneseq
        %v557 = vshrl.u32 %v556, 7
        %v558 = vsub.s32 %v555, %v557
        %v559 = vrot.slane %v551, %v558
        %560 = vrot.lane.b32.xlu0 %v559, 24
        %v561 = vpop.permute.xlu0 %560
        %vm563 = vcmask 255168
        %564 = vst.msk [vmem:[#allocation2] sm:$0x3] %vm563, %v561
        %v565 = vld [vmem:[%s208 + $0x4] sm:$0x1]
        %v566 = vld [vmem:[%s208 + $0xc] sm:$0x1]
        %v567 = vld [vmem:[%s208 + $0x14] sm:$0x1]
        %v568 = vld [vmem:[%s208 + $0x1c] sm:$0x1]
        %v569 = vpack.c.bf16 %v565, %v565
        %v570 = vpack.c.bf16 %v566, %v566
        %v571 = vpack.c.bf16 %v567, %v567
        %v572 = vpack.c.bf16 %v568, %v568
        %v577 = vunpack.c.l.b16 %v569
        %v578 = vunpack.c.l.b16 %v570
        %v579 = vunpack.c.l.b16 %v571
        %v580 = vunpack.c.l.b16 %v572
        %v581 = vrot.slane %v578, 7
        %v582 = vsel %vm257, %v581, %v577
        %v583 = vrot.slane %v579, 6
        %v584 = vsel %vm260, %v583, %v582
        %v585 = vrot.slane %v580, 5
        %v586 = vsel %vm263, %v585, %v584
        %v587 = vpack.c.b16 %v586, %v586
        %v589 = vsel %vm278, %v587, 0
        %591 = vmatprep.subr.bf16.mxu0 0
        %592 = vmatpush1.bf16.msra.mxu0 0
        %593 = vmatprep.subr.bf16.mxu0 0
        %594 = vmatpush1.bf16.msra.mxu0 0
        %595 = vmatprep.subr.bf16.mxu0 0
        %596 = vmatpush1.bf16.msra.mxu0 0
        %597 = vmatprep.subr.bf16.mxu0 0
        %598 = vmatpush1.bf16.msra.mxu0 0
        %599 = vmatprep.subr.bf16.mxu0 0
        %600 = vmatpush1.bf16.msra.mxu0 0
        %601 = vmatprep.subr.bf16.mxu0 0
        %602 = vmatpush1.bf16.msra.mxu0 0
        %603 = vmatprep.subr.bf16.mxu0 0
        %604 = vmatpush1.bf16.msra.mxu0 %v275
        %605 = vmatprep.subr.bf16.mxu0 0
        %606 = vmatpush1.bf16.msra.mxu0 %v274
        %607 = vmatprep.subr.bf16.mxu0 0
        %608 = vmatpush2.bf16.msra.mxu0 0
        %609 = vmatprep.subr.bf16.mxu0 0
        %610 = vmatpush2.bf16.msra.mxu0 0
        %611 = vmatprep.subr.bf16.mxu0 0
        %612 = vmatpush2.bf16.msra.mxu0 0
        %613 = vmatprep.subr.bf16.mxu0 0
        %614 = vmatpush2.bf16.msra.mxu0 0
        %615 = vmatprep.subr.bf16.mxu0 0
        %616 = vmatpush2.bf16.msra.mxu0 0
        %617 = vmatprep.subr.bf16.mxu0 0
        %618 = vmatpush2.bf16.msra.mxu0 0
        %619 = vmatprep.subr.bf16.mxu0 0
        %620 = vmatpush2.bf16.msra.mxu0 0
        %621 = vmatprep.subr.bf16.mxu0 0
        %622 = vmatpush2.bf16.msra.mxu0 0
        %623 = vmatprep.mubr.bf16.mxu0 0
        %624 = vmatmul.mubr.bf16.gmra.mxu0 %v589
        %v625 = vpop.f32.mrf.mxu0
        %v626 = vadd.f32 0.0, %v625
        %v627 = vpop.f32.mrf.mxu0
        %v628 = vpop.f32.mrf.mxu0
        %v629 = vpop.f32.mrf.mxu0
        %630 = vdwg.mxu0
        %v631 = vpack.c.bf16 %v626, %v626
        %v634 = vunpack.c.l.s4 1983009808
        %v635 = vunpack.c.0.s8 %v634
        %v636 = vlaneseq
        %v637 = vshrl.u32 %v636, 7
        %v638 = vsub.s32 %v635, %v637
        %v639 = vrot.slane %v631, %v638
        %640 = vrot.lane.b32.xlu0 %v639, 32
        %v641 = vpop.permute.xlu0 %640
        %vm643 = vcmask 320768
        %644 = vst.msk [vmem:[#allocation2] sm:$0x3] %vm643, %v641
        %v645 = vld [vmem:[%s208 + $0x5] sm:$0x1]
        %v646 = vld [vmem:[%s208 + $0xd] sm:$0x1]
        %v647 = vld [vmem:[%s208 + $0x15] sm:$0x1]
        %v648 = vld [vmem:[%s208 + $0x1d] sm:$0x1]
        %v649 = vpack.c.bf16 %v645, %v645
        %v650 = vpack.c.bf16 %v646, %v646
        %v651 = vpack.c.bf16 %v647, %v647
        %v652 = vpack.c.bf16 %v648, %v648
        %v657 = vunpack.c.l.b16 %v649
        %v658 = vunpack.c.l.b16 %v650
        %v659 = vunpack.c.l.b16 %v651
        %v660 = vunpack.c.l.b16 %v652
        %v661 = vrot.slane %v658, 7
        %v662 = vsel %vm257, %v661, %v657
        %v663 = vrot.slane %v659, 6
        %v664 = vsel %vm260, %v663, %v662
        %v665 = vrot.slane %v660, 5
        %v666 = vsel %vm263, %v665, %v664
        %v667 = vpack.c.b16 %v666, %v666
        %v669 = vsel %vm278, %v667, 0
        %671 = vmatprep.subr.bf16.mxu0 0
        %672 = vmatpush1.bf16.msra.mxu0 0
        %673 = vmatprep.subr.bf16.mxu0 0
        %674 = vmatpush1.bf16.msra.mxu0 0
        %675 = vmatprep.subr.bf16.mxu0 0
        %676 = vmatpush1.bf16.msra.mxu0 0
        %677 = vmatprep.subr.bf16.mxu0 0
        %678 = vmatpush1.bf16.msra.mxu0 0
        %679 = vmatprep.subr.bf16.mxu0 0
        %680 = vmatpush1.bf16.msra.mxu0 0
        %681 = vmatprep.subr.bf16.mxu0 0
        %682 = vmatpush1.bf16.msra.mxu0 0
        %683 = vmatprep.subr.bf16.mxu0 0
        %684 = vmatpush1.bf16.msra.mxu0 %v275
        %685 = vmatprep.subr.bf16.mxu0 0
        %686 = vmatpush1.bf16.msra.mxu0 %v274
        %687 = vmatprep.subr.bf16.mxu0 0
        %688 = vmatpush2.bf16.msra.mxu0 0
        %689 = vmatprep.subr.bf16.mxu0 0
        %690 = vmatpush2.bf16.msra.mxu0 0
        %691 = vmatprep.subr.bf16.mxu0 0
        %692 = vmatpush2.bf16.msra.mxu0 0
        %693 = vmatprep.subr.bf16.mxu0 0
        %694 = vmatpush2.bf16.msra.mxu0 0
        %695 = vmatprep.subr.bf16.mxu0 0
        %696 = vmatpush2.bf16.msra.mxu0 0
        %697 = vmatprep.subr.bf16.mxu0 0
        %698 = vmatpush2.bf16.msra.mxu0 0
        %699 = vmatprep.subr.bf16.mxu0 0
        %700 = vmatpush2.bf16.msra.mxu0 0
        %701 = vmatprep.subr.bf16.mxu0 0
        %702 = vmatpush2.bf16.msra.mxu0 0
        %703 = vmatprep.mubr.bf16.mxu0 0
        %704 = vmatmul.mubr.bf16.gmra.mxu0 %v669
        %v705 = vpop.f32.mrf.mxu0
        %v706 = vadd.f32 0.0, %v705
        %v707 = vpop.f32.mrf.mxu0
        %v708 = vpop.f32.mrf.mxu0
        %v709 = vpop.f32.mrf.mxu0
        %710 = vdwg.mxu0
        %v711 = vpack.c.bf16 %v706, %v706
        %v714 = vunpack.c.l.s4 1983009808
        %v715 = vunpack.c.0.s8 %v714
        %v716 = vlaneseq
        %v717 = vshrl.u32 %v716, 7
        %v718 = vsub.s32 %v715, %v717
        %v719 = vrot.slane %v711, %v718
        %720 = vrot.lane.b32.xlu0 %v719, 40
        %v721 = vpop.permute.xlu0 %720
        %vm723 = vcmask 386368
        %724 = vst.msk [vmem:[#allocation2] sm:$0x3] %vm723, %v721
        %v725 = vld [vmem:[%s208 + $0x6] sm:$0x1]
        %v726 = vld [vmem:[%s208 + $0xe] sm:$0x1]
        %v727 = vld [vmem:[%s208 + $0x16] sm:$0x1]
        %v728 = vld [vmem:[%s208 + $0x1e] sm:$0x1]
        %v729 = vpack.c.bf16 %v725, %v725
        %v730 = vpack.c.bf16 %v726, %v726
        %v731 = vpack.c.bf16 %v727, %v727
        %v732 = vpack.c.bf16 %v728, %v728
        %v737 = vunpack.c.l.b16 %v729
        %v738 = vunpack.c.l.b16 %v730
        %v739 = vunpack.c.l.b16 %v731
        %v740 = vunpack.c.l.b16 %v732
        %v741 = vrot.slane %v738, 7
        %v742 = vsel %vm257, %v741, %v737
        %v743 = vrot.slane %v739, 6
        %v744 = vsel %vm260, %v743, %v742
        %v745 = vrot.slane %v740, 5
        %v746 = vsel %vm263, %v745, %v744
        %v747 = vpack.c.b16 %v746, %v746
        %v749 = vsel %vm278, %v747, 0
        %751 = vmatprep.subr.bf16.mxu0 0
        %752 = vmatpush1.bf16.msra.mxu0 0
        %753 = vmatprep.subr.bf16.mxu0 0
        %754 = vmatpush1.bf16.msra.mxu0 0
        %755 = vmatprep.subr.bf16.mxu0 0
        %756 = vmatpush1.bf16.msra.mxu0 0
        %757 = vmatprep.subr.bf16.mxu0 0
        %758 = vmatpush1.bf16.msra.mxu0 0
        %759 = vmatprep.subr.bf16.mxu0 0
        %760 = vmatpush1.bf16.msra.mxu0 0
        %761 = vmatprep.subr.bf16.mxu0 0
        %762 = vmatpush1.bf16.msra.mxu0 0
        %763 = vmatprep.subr.bf16.mxu0 0
        %764 = vmatpush1.bf16.msra.mxu0 %v275
        %765 = vmatprep.subr.bf16.mxu0 0
        %766 = vmatpush1.bf16.msra.mxu0 %v274
        %767 = vmatprep.subr.bf16.mxu0 0
        %768 = vmatpush2.bf16.msra.mxu0 0
        %769 = vmatprep.subr.bf16.mxu0 0
        %770 = vmatpush2.bf16.msra.mxu0 0
        %771 = vmatprep.subr.bf16.mxu0 0
        %772 = vmatpush2.bf16.msra.mxu0 0
        %773 = vmatprep.subr.bf16.mxu0 0
        %774 = vmatpush2.bf16.msra.mxu0 0
        %775 = vmatprep.subr.bf16.mxu0 0
        %776 = vmatpush2.bf16.msra.mxu0 0
        %777 = vmatprep.subr.bf16.mxu0 0
        %778 = vmatpush2.bf16.msra.mxu0 0
        %779 = vmatprep.subr.bf16.mxu0 0
        %780 = vmatpush2.bf16.msra.mxu0 0
        %781 = vmatprep.subr.bf16.mxu0 0
        %782 = vmatpush2.bf16.msra.mxu0 0
        %783 = vmatprep.mubr.bf16.mxu0 0
        %784 = vmatmul.mubr.bf16.gmra.mxu0 %v749
        %v785 = vpop.f32.mrf.mxu0
        %v786 = vadd.f32 0.0, %v785
        %v787 = vpop.f32.mrf.mxu0
        %v788 = vpop.f32.mrf.mxu0
        %v789 = vpop.f32.mrf.mxu0
        %790 = vdwg.mxu0
        %v791 = vpack.c.bf16 %v786, %v786
        %v794 = vunpack.c.l.s4 1983009808
        %v795 = vunpack.c.0.s8 %v794
        %v796 = vlaneseq
        %v797 = vshrl.u32 %v796, 7
        %v798 = vsub.s32 %v795, %v797
        %v799 = vrot.slane %v791, %v798
        %800 = vrot.lane.b32.xlu0 %v799, 48
        %v801 = vpop.permute.xlu0 %800
        %vm803 = vcmask 451968
        %804 = vst.msk [vmem:[#allocation2] sm:$0x3] %vm803, %v801
        %v805 = vld [vmem:[%s208 + $0x7] sm:$0x1]
        %v806 = vld [vmem:[%s208 + $0xf] sm:$0x1]
        %v807 = vld [vmem:[%s208 + $0x17] sm:$0x1]
        %v808 = vld [vmem:[%s208 + $0x1f] sm:$0x1]
        %v809 = vpack.c.bf16 %v805, %v805
        %v810 = vpack.c.bf16 %v806, %v806
        %v811 = vpack.c.bf16 %v807, %v807
        %v812 = vpack.c.bf16 %v808, %v808
        %v817 = vunpack.c.l.b16 %v809
        %v818 = vunpack.c.l.b16 %v810
        %v819 = vunpack.c.l.b16 %v811
        %v820 = vunpack.c.l.b16 %v812
        %v821 = vrot.slane %v818, 7
        %v822 = vsel %vm257, %v821, %v817
        %v823 = vrot.slane %v819, 6
        %v824 = vsel %vm260, %v823, %v822
        %v825 = vrot.slane %v820, 5
        %v826 = vsel %vm263, %v825, %v824
        %v827 = vpack.c.b16 %v826, %v826
        %v829 = vsel %vm278, %v827, 0
        %831 = vmatprep.subr.bf16.mxu0 0
        %832 = vmatpush1.bf16.msra.mxu0 0
        %833 = vmatprep.subr.bf16.mxu0 0
        %834 = vmatpush1.bf16.msra.mxu0 0
        %835 = vmatprep.subr.bf16.mxu0 0
        %836 = vmatpush1.bf16.msra.mxu0 0
        %837 = vmatprep.subr.bf16.mxu0 0
        %838 = vmatpush1.bf16.msra.mxu0 0
        %839 = vmatprep.subr.bf16.mxu0 0
        %840 = vmatpush1.bf16.msra.mxu0 0
        %841 = vmatprep.subr.bf16.mxu0 0
        %842 = vmatpush1.bf16.msra.mxu0 0
        %843 = vmatprep.subr.bf16.mxu0 0
        %844 = vmatpush1.bf16.msra.mxu0 %v275
        %845 = vmatprep.subr.bf16.mxu0 0
        %846 = vmatpush1.bf16.msra.mxu0 %v274
        %847 = vmatprep.subr.bf16.mxu0 0
        %848 = vmatpush2.bf16.msra.mxu0 0
        %849 = vmatprep.subr.bf16.mxu0 0
        %850 = vmatpush2.bf16.msra.mxu0 0
        %851 = vmatprep.subr.bf16.mxu0 0
        %852 = vmatpush2.bf16.msra.mxu0 0
        %853 = vmatprep.subr.bf16.mxu0 0
        %854 = vmatpush2.bf16.msra.mxu0 0
        %855 = vmatprep.subr.bf16.mxu0 0
        %856 = vmatpush2.bf16.msra.mxu0 0
        %857 = vmatprep.subr.bf16.mxu0 0
        %858 = vmatpush2.bf16.msra.mxu0 0
        %859 = vmatprep.subr.bf16.mxu0 0
        %860 = vmatpush2.bf16.msra.mxu0 0
        %861 = vmatprep.subr.bf16.mxu0 0
        %862 = vmatpush2.bf16.msra.mxu0 0
        %863 = vmatprep.mubr.bf16.mxu0 0
        %864 = vmatmul.mubr.bf16.gmra.mxu0 %v829
        %v865 = vpop.f32.mrf.mxu0
        %v866 = vadd.f32 0.0, %v865
        %v867 = vpop.f32.mrf.mxu0
        %v868 = vpop.f32.mrf.mxu0
        %v869 = vpop.f32.mrf.mxu0
        %870 = vdwg.mxu0
        %v871 = vpack.c.bf16 %v866, %v866
        %v874 = vunpack.c.l.s4 1983009808
        %v875 = vunpack.c.0.s8 %v874
        %v876 = vlaneseq
        %v877 = vshrl.u32 %v876, 7
        %v878 = vsub.s32 %v875, %v877
        %v879 = vrot.slane %v871, %v878
        %880 = vrot.lane.b32.xlu0 %v879, 56
        %v881 = vpop.permute.xlu0 %880
        %vm883 = vcmask 517568
        %884 = vst.msk [vmem:[#allocation2] sm:$0x3] %vm883, %v881
        %v885 = vld [vmem:[#allocation2] sm:$0x3]
        %887 = vset.pattern.permute.xlu0 0
        %888 = vperm.xlu0 %887, %v239
        %v889 = vpop.permute.xlu0 %888
        %vm891 = vcmask 31744
        %v893 = vsel %vm891, %v234, 0
        %vm895 = vcmask 1041408
        %v897 = vsel %vm895, %v885, 0
        %899 = vmatprep.subr.bf16.mxu0 0
        %900 = vmatpush1.bf16.msra.mxu0 0
        %901 = vmatprep.subr.bf16.mxu0 0
        %902 = vmatpush1.bf16.msra.mxu0 0
        %903 = vmatprep.subr.bf16.mxu0 0
        %904 = vmatpush1.bf16.msra.mxu0 0
        %905 = vmatprep.subr.bf16.mxu0 0
        %906 = vmatpush1.bf16.msra.mxu0 0
        %907 = vmatprep.subr.bf16.mxu0 0
        %908 = vmatpush1.bf16.msra.mxu0 0
        %909 = vmatprep.subr.bf16.mxu0 0
        %910 = vmatpush1.bf16.msra.mxu0 0
        %911 = vmatprep.subr.bf16.mxu0 0
        %912 = vmatpush1.bf16.msra.mxu0 0
        %913 = vmatprep.subr.bf16.mxu0 0
        %914 = vmatpush1.bf16.msra.mxu0 %v897
        %915 = vmatprep.subr.bf16.mxu0 0
        %916 = vmatpush2.bf16.msra.mxu0 0
        %917 = vmatprep.subr.bf16.mxu0 0
        %918 = vmatpush2.bf16.msra.mxu0 0
        %919 = vmatprep.subr.bf16.mxu0 0
        %920 = vmatpush2.bf16.msra.mxu0 0
        %921 = vmatprep.subr.bf16.mxu0 0
        %922 = vmatpush2.bf16.msra.mxu0 0
        %923 = vmatprep.subr.bf16.mxu0 0
        %924 = vmatpush2.bf16.msra.mxu0 0
        %925 = vmatprep.subr.bf16.mxu0 0
        %926 = vmatpush2.bf16.msra.mxu0 0
        %927 = vmatprep.subr.bf16.mxu0 0
        %928 = vmatpush2.bf16.msra.mxu0 0
        %929 = vmatprep.subr.bf16.mxu0 0
        %930 = vmatpush2.bf16.msra.mxu0 0
        %931 = vmatprep.mubr.bf16.mxu0 0
        %932 = vmatmul.mubr.bf16.gmra.mxu0 %v893
        %v933 = vpop.f32.mrf.mxu0
        %v934 = vadd.f32 %v889, %v933
        %v935 = vpop.f32.mrf.mxu0
        %v936 = vpop.f32.mrf.mxu0
        %v937 = vpop.f32.mrf.mxu0
        %938 = vdwg.mxu0
        %vm939 = vcmask 517120
        %940 = vst.msk [vmem:[%s232] sm:$0x3] %vm939, %v934
        %s941 = sand.u32 %s134, 1
        %s942 = scalar_lea.sflag [#allocation5], %s941
        %s943 = sand.u32 %s134, 1
        %s944 = smul.addr %s943, 2
        %s945 = scalar_lea.vmem [#allocation6], %s944
        // Predicated region
        $region41: #{tpu_custom_call.1} parent=35 // pred_check
          %p946 = pneg %p144
        $region42: #{tpu_custom_call.1} parent=35 // pred_check_branch
          %948 = sbr.rel (%p946) target = $region44
        $region43: #{tpu_custom_call.1} parent=35 // pred_region
          %s950 = ssub.s32 32, 32
          %951 = vsyncadd %s942, %s950
          %s952 = sadd.s32 %s26, %s25
          %s953 = smul.addr %s952, 32
          %s954 = scalar_lea.hbm %s4, %s953
          %s956 = sshll.u32 %s945, 4
          %s957 = int_to_ptr.vmem [resolvable:$true] %s956
          %959 = dma.vmem_to_hbm [thread:$0]  %s957, 32, %s954, %s942
        $region44: #{tpu_custom_call.1} parent=35 // pred_fallthru
          _
      $region36: #{tpu_custom_call.1} parent=5 // pred_fallthru
        _
      %p960 = scmp.le.s32.totalorder 2, %s16
      // Predicated region
      $region45: #{tpu_custom_call.1} parent=5 // pred_check
        %p961 = pneg %p960
      $region46: #{tpu_custom_call.1} parent=5 // pred_check_branch
        %963 = sbr.rel (%p961) target = $region48
      $region47: #{tpu_custom_call.1} parent=5 // pred_region
        %s964 = ssub.s32 %s16, 2
        // Predicated region
        $region49: #{tpu_custom_call.1} parent=47 // pred_check
          %p965 = pneg %p150
        $region50: #{tpu_custom_call.1} parent=47 // pred_check_branch
          %967 = sbr.rel (%p965) target = $region52
        $region51: #{tpu_custom_call.1} parent=47 // pred_region
          %s968 = sand.u32 %s135, 1
          %s969 = scalar_lea.sflag [#allocation5], %s968
          %s970 = sand.u32 %s135, 1
          %s971 = smul.addr %s970, 2
          %s972 = scalar_lea.vmem [#allocation6], %s971
          %973 = dma.done %s969, 32
        $region52: #{tpu_custom_call.1} parent=47 // pred_fallthru
          _
      $region48: #{tpu_custom_call.1} parent=5 // pred_fallthru
        _
    $region6: #{tpu_custom_call.1} parent=1 // loop_footer
      %s20 = sadd.s32 1, %s16
    $region7: #{tpu_custom_call.1} parent=1 // loop_footer_branch
      %15 = sbr.rel target = $region3
    $region8: #{tpu_custom_call.1} parent=1 // loop_exit
      _
    %974 = vsyncpa [#allocation4], 1
    %s975 = scalar_lea.sflag [#allocation4], 1
    %976 = vsyncpa %s975, 1
    %977 = vsyncpa [#allocation5], 1
    %s978 = scalar_lea.sflag [#allocation5], 1
    %979 = vsyncpa %s978, 1

</llo_original>
